<compile_context>
chip_gen: v6e
topology: v6e:2x2x1
jax: 0.10.0
libtpu: 0.0.40
codegen_flags: <defaults>
</compile_context>

<pallas_src>
import functools

import jax
import jax.numpy as jnp
import numpy as np
from jax.experimental import pallas as pl
from jax.experimental.pallas import tpu as pltpu


# ----------------------------------------------------------------------------
# pltpu.roll direction probe (runs once, cached; called outside jit).
# We need "next neighbour" semantics out[i] == x[(i + k) % n]; this pins down
# which non-negative shift achieves that on the installed JAX/Mosaic (and acts
# as the runtime unit test of the convention the review asked for).
# ----------------------------------------------------------------------------
def _roll_probe_kernel(x_ref, o_ref):
    o_ref[...] = pltpu.roll(x_ref[...], 1, 1)


@functools.cache
def _roll_matches_numpy() -> bool:
    x = jnp.arange(8 * 128, dtype=jnp.float32).reshape(8, 128)
    y = pl.pallas_call(
        _roll_probe_kernel,
        out_shape=jax.ShapeDtypeStruct((8, 128), jnp.float32),
        in_specs=[pl.BlockSpec(memory_space=pltpu.MemorySpace.VMEM)],
        out_specs=pl.BlockSpec(memory_space=pltpu.MemorySpace.VMEM),
    )(x)
    return bool(y[0, 0] == x[0, 127])   # np.roll semantics: out[i] = x[i - shift]


def _next_shift(k: int, n: int) -> int:
    """Positive shift s so that pltpu.roll(x, s, axis)[i] == x[(i + k) % n]."""
    return (n - k) % n if _roll_matches_numpy() else k % n


def _vmem_limit_bytes() -> int:
    """Generation-aware scoped VMEM budget (v7x: ~48MiB, v5e/v6e: up to 96MiB)."""
    phys = None
    try:
        phys = getattr(pltpu.get_tpu_info(), "vmem_capacity_bytes", None)
    except Exception:
        phys = None
    if not phys:
        return 48 * 1024 * 1024
    return int(max(32 * 1024 * 1024,
                   min(int(phys) - 16 * 1024 * 1024, 96 * 1024 * 1024)))


def _choose_row_tile(C: int, H: int, W: int, in_itemsize: int) -> int:
    """Largest row tile TH with H % TH == 0, (TH*W) % 128 == 0 (or TH == H),
    whose per-step VMEM footprint fits a conservative budget."""
    budget = 20 * 1024 * 1024
    cands = [th for th in range(1, H + 1)
             if H % th == 0 and ((th * W) % 128 == 0 or th == H)]

    def footprint(th):
        lw = th * W
        # 2x double-buffered input slab + ~14 f32 temporaries + (LW,128) ones RHS
        return 2 * C * lw * in_itemsize + 14 * C * lw * 4 + lw * 128 * 4

    fitting = [th for th in cands if footprint(th) <= budget]
    return max(fitting) if fitting else min(cands)


def _softmax_cols(logits):
    """Softmax over axis 0 of a small (C, n) f32 block."""
    m = jnp.max(logits, axis=0, keepdims=True)
    e = jnp.exp(logits - m)
    return e * pl.reciprocal(jnp.sum(e, axis=0, keepdims=True), approx=True)


# ----------------------------------------------------------------------------
# Kernel: one (batch element, row tile) per grid step.
# Packed output rows: [0:C) counts, [C:2C) CE sums, [2C:3C) dice inter,
# [3C:4C) dice psum, [4C] edge partial, rest zero padding.
# ----------------------------------------------------------------------------
def _modded_loss_tile_kernel(preds_ref, tgt_ref, mask_ref, bndp_ref, bndt_ref,
                             out_ref, *, shift_x, shift_y):
    C, LW = preds_ref.shape
    W = bndp_ref.shape[-1]
    R_PAD = out_ref.shape[0]
    t = pl.program_id(1)

    logits = preds_ref[...].astype(jnp.float32)            # (C, LW)
    tgt = tgt_ref[...]                                      # (1, LW) int32
    tgtf = tgt.astype(jnp.float32)                          # rolled as f32 (exact)

    # One-hot via a (C, 1) iota broadcast against the (1, LW) target row.
    cls = jax.lax.broadcasted_iota(jnp.int32, (C, 1), 0)
    onehot = (cls == tgt).astype(jnp.float32)               # (C, LW)

    # Softmax / log-softmax over the class (sublane) axis.  CE path is exact;
    # only p uses the (cheap, EUP) approximate reciprocal.
    m = jnp.max(logits, axis=0, keepdims=True)              # (1, LW)
    z = logits - m
    ez = jnp.exp(z)
    se = jnp.sum(ez, axis=0, keepdims=True)                 # (1, LW)
    p = ez * pl.reciprocal(se, approx=True)                 # softmax
    neg_logp = jnp.log(se) - z                              # -log_softmax

    # ---- Edge term, in-tile part ------------------------------------------
    masks = mask_ref[...]                                   # (2, LW)
    mask_x = masks[0:1, :]                                  # w<W-1 & global h<H-1
    mask_y = masks[1:2, :]                                  # w<W-1 & local h<TH-1

    t_x = pltpu.roll(tgtf, shift_x, 1)                      # (1, LW) target @ (h, w+1)
    t_y = pltpu.roll(tgtf, shift_y, 1)                      # (1, LW) target @ (h+1, w)
    p_x = pltpu.roll(p, shift_x, 1)                         # (C, LW)
    p_y = pltpu.roll(p, shift_y, 1)

    gt_x = 2.0 * (tgtf != t_x).astype(jnp.float32)          # sum_c |onehot diff|
    gt_y = 2.0 * (tgtf != t_y).astype(jnp.float32)
    gp_x = jnp.sum(jnp.abs(p - p_x), axis=0, keepdims=True)  # (1, LW)
    gp_y = jnp.sum(jnp.abs(p - p_y), axis=0, keepdims=True)
    edge_lane = (gt_x - gp_x) * mask_x + (gt_y - gp_y) * mask_y  # (1, LW)

    # ---- Edge term, cross-tile boundary (y-gradient of this tile's last row).
    # For the last tile the wrapper duplicates the row, so this is exactly 0.
    pb_prev = _softmax_cols(bndp_ref[0].astype(jnp.float32))     # (C, W)
    pb_next = _softmax_cols(bndp_ref[1].astype(jnp.float32))
    tb_prev = bndt_ref[0]                                        # (1, W) int32
    tb_next = bndt_ref[1]
    gt_by = 2.0 * (tb_prev != tb_next).astype(jnp.float32)       # (1, W)
    gp_by = jnp.sum(jnp.abs(pb_prev - pb_next), axis=0, keepdims=True)
    wmask = (jax.lax.broadcasted_iota(jnp.int32, (1, W), 1)
             < (W - 1)).astype(jnp.float32)
    cross = jnp.sum((gt_by - gp_by) * wmask)                     # scalar

    # ---- All lane reductions on the (otherwise idle) MXU -------------------
    ones_rhs = jnp.ones((LW, 128), jnp.float32)

    def rowsum(x):
        return jnp.dot(x, ones_rhs, preferred_element_type=jnp.float32)

    cnt128 = rowsum(onehot)                                  # (C, 128) pixel counts
    ce128 = rowsum(onehot * neg_logp)                        # (C, 128) sum -logp
    inter128 = rowsum(p * onehot)                            # (C, 128) dice inter
    psum128 = rowsum(p)                                      # (C, 128) dice psum
    edge128 = rowsum(edge_lane) + cross                      # (1, 128)

    pieces = [cnt128, ce128, inter128, psum128, edge128]
    pad = R_PAD - (4 * C + 1)
    if pad:
        pieces.append(jnp.zeros((pad, 128), jnp.float32))
    partial = jnp.concatenate(pieces, axis=0)                # (R_PAD, 128)

    @pl.when(t == 0)
    def _():
        out_ref[...] = jnp.zeros_like(out_ref)

    out_ref[...] += partial


def modded_loss_pallas(preds, targets, row_tile=None):
    """preds: (B, C, H, W) float logits (f32 or bf16); targets: (B, H, W) ints."""
    B, C, H, W = preds.shape
    in_itemsize = jnp.dtype(preds.dtype).itemsize
    TH = _choose_row_tile(C, H, W, in_itemsize) if row_tile is None else int(row_tile)
    assert H % TH == 0 and ((TH * W) % 128 == 0 or TH == H), (TH, H, W)
    T = H // TH
    LW = TH * W
    R_PAD = ((4 * C + 1 + 7) // 8) * 8
    n_pix = float(B * H * W)

    # Lane-dense views (reshape wrapper-side, not inside the kernel).
    preds_flat = preds.reshape(B, C, H * W)
    tgt_i32 = targets.astype(jnp.int32)
    tgt_flat = tgt_i32.reshape(B, 1, H * W)

    # Per-tile edge masks: row 0 = x-gradient mask, row 1 = y-gradient mask.
    mask_np = np.zeros((T, 2, TH, W), dtype=np.float32)
    mask_np[:, 0, :, : W - 1] = 1.0           # x: w < W-1 ...
    mask_np[T - 1, 0, TH - 1, :] = 0.0        # ... and global h < H-1
    mask_np[:, 1, : TH - 1, : W - 1] = 1.0    # y: w < W-1 and local h < TH-1
    masks = jnp.asarray(mask_np.reshape(T, 2, LW))

    # Boundary row pairs (last row of tile t, first row of tile t+1).  The last
    # tile's pair is the same row twice so its cross contribution is zero.
    lastr = preds[:, :, TH - 1::TH, :]                        # (B, C, T, W)
    firstr = preds[:, :, 0::TH, :]                            # (B, C, T, W)
    nxtr = jnp.concatenate([firstr[:, :, 1:, :], lastr[:, :, T - 1:T, :]], axis=2)
    bnd_p = jnp.transpose(jnp.stack([lastr, nxtr], axis=0), (1, 3, 0, 2, 4))

    t4 = tgt_i32[:, None]                                     # (B, 1, H, W)
    lastt = t4[:, :, TH - 1::TH, :]
    firstt = t4[:, :, 0::TH, :]
    nxtt = jnp.concatenate([firstt[:, :, 1:, :], lastt[:, :, T - 1:T, :]], axis=2)
    bnd_t = jnp.transpose(jnp.stack([lastt, nxtt], axis=0), (1, 3, 0, 2, 4))

    kernel = functools.partial(
        _modded_loss_tile_kernel,
        shift_x=_next_shift(1, LW),     # flattened (h, w) -> (h, w+1)
        shift_y=_next_shift(W, LW),     # flattened (h, w) -> (h+1, w)
    )

    out = pl.pallas_call(
        kernel,
        grid=(B, T),
        in_specs=[
            pl.BlockSpec((None, C, LW), lambda b, t: (b, 0, t)),
            pl.BlockSpec((None, 1, LW), lambda b, t: (b, 0, t)),
            pl.BlockSpec((None, 2, LW), lambda b, t: (t, 0, 0)),
            pl.BlockSpec((None, None, 2, C, W), lambda b, t: (b, t, 0, 0, 0)),
            pl.BlockSpec((None, None, 2, 1, W), lambda b, t: (b, t, 0, 0, 0)),
        ],
        out_specs=pl.BlockSpec((None, R_PAD, 128), lambda b, t: (b, 0, 0)),
        out_shape=jax.ShapeDtypeStruct((B, R_PAD, 128), jnp.float32),
        compiler_params=pltpu.CompilerParams(
            dimension_semantics=("parallel", "arbitrary"),
            vmem_limit_bytes=_vmem_limit_bytes(),
        ),
    )(preds_flat, tgt_flat, masks, bnd_p, bnd_t)

    # Tiny finalize (O(B*C) scalars).  The class-weight histogram is a global
    # dependency, so weights are applied here from the accumulated counts;
    # dice denominators are divided exactly here.
    col = out[:, :, 0]                                        # (B, R_PAD)
    cnt_bc = col[:, 0:C]
    ce_bc = col[:, C:2 * C]
    inter_bc = col[:, 2 * C:3 * C]
    psum_bc = col[:, 3 * C:4 * C]
    edge_b = col[:, 4 * C]

    counts_c = jnp.sum(cnt_bc, axis=0)                        # (C,)
    s_c = jnp.sum(ce_bc, axis=0)                              # (C,)
    weights = 1.0 - counts_c / n_pix                          # w[c] = 1 - count/n_pix
    ce = jnp.sum(weights * s_c) / jnp.sum(weights * counts_c)
    dice = 2.0 * inter_bc / (psum_bc + cnt_bc)
    dice_loss = 1.0 - jnp.mean(dice)
    edge = jnp.sum(edge_b) / float(B * C * (H - 1) * (W - 1))
    return ce + dice_loss + edge


def modded_loss_ref(preds, targets):
    """Pure-JAX reference mirroring the PyTorch ModdedLoss.forward."""
    B, C, H, W = preds.shape
    n_pix = B * H * W
    onehot = jnp.transpose(jax.nn.one_hot(targets, C, dtype=jnp.float32),
                           (0, 3, 1, 2))                      # (B, C, H, W)
    counts = jnp.sum(onehot, axis=(0, 2, 3))
    weights = 1.0 - counts / n_pix

    logp = jax.nn.log_softmax(preds, axis=1)
    p = jax.nn.softmax(preds, axis=1)

    w_pix = weights[targets]                                   # (B, H, W)
    logp_t = jnp.take_along_axis(logp, targets[:, None], axis=1)[:, 0]
    ce = -jnp.sum(w_pix * logp_t) / jnp.sum(w_pix)

    inter = jnp.sum(p * onehot, axis=(2, 3))
    dice = 2.0 * inter / (jnp.sum(p, axis=(2, 3)) + jnp.sum(onehot, axis=(2, 3)))
    dice_loss = 1.0 - jnp.mean(dice)

    gpx = jnp.abs(p[:, :, :, :-1] - p[:, :, :, 1:])
    gpy = jnp.abs(p[:, :, :-1, :] - p[:, :, 1:, :])
    gtx = jnp.abs(onehot[:, :, :, :-1] - onehot[:, :, :, 1:])
    gty = jnp.abs(onehot[:, :, :-1, :] - onehot[:, :, 1:, :])
    gp = gpx[:, :, :-1, :] + gpy[:, :, :, :-1]
    gt = gtx[:, :, :-1, :] + gty[:, :, :, :-1]
    edge = jnp.mean(gt - gp)
    return ce + dice_loss + edge


if __name__ == "__main__":
    # TODO(synk): the SSIM submodule exists in the PyTorch file but is never
    # used in ModdedLoss.forward, so it is intentionally not implemented here.
    B, C, H, W = 2, 4, 16, 16
    key = jax.random.PRNGKey(0)
    kp, kt = jax.random.split(key)
    preds = jax.random.normal(kp, (B, C, H, W), dtype=jnp.float32)
    targets = jax.random.randint(kt, (B, H, W), 0, C, dtype=jnp.int32)
    # Guarantee every class appears (matches the PyTorch module's implicit assumption).
    targets = targets.at[0, 0, :C].set(jnp.arange(C, dtype=jnp.int32))

    ref = jax.block_until_ready(modded_loss_ref(preds, targets))
    # Run both the auto-selected tiling (single spatial tile at this size) and a
    # forced 2-tile configuration that exercises the cross-tile boundary path.
    for rt in (None, 8):
        loss = jax.block_until_ready(modded_loss_pallas(preds, targets, row_tile=rt))
        # Tolerance accounts for the EUP approximate reciprocal in the softmax.
        assert jnp.allclose(loss, ref, atol=5e-3, rtol=5e-3), (rt, loss, ref)
    print("KERNEL_OK")
</pallas_src>

<mosaic_0001>
module attributes {stable_mosaic.version = 11 : i64} {
  func.func @_roll_probe_kernel(%arg0: memref<8x128xf32, #tpu.memory_space<vmem>>, %arg1: memref<8x128xf32, #tpu.memory_space<vmem>>) attributes {dimension_semantics = [], scalar_prefetch = 0 : i64, scratch_operands = 0 : i64, tpu.core_type = #tpu.core_type<tc>} {
    %c0 = arith.constant 0 : index
    %c0_0 = arith.constant 0 : index
    %0 = vector.load %arg0[%c0, %c0_0] : memref<8x128xf32, #tpu.memory_space<vmem>>, vector<8x128xf32>
    %c1_i32 = arith.constant 1 : i32
    %1 = tpu.dynamic_rotate %0 by %c1_i32 dim 1 : vector<8x128xf32>, i32 -> vector<8x128xf32>
    %c0_1 = arith.constant 0 : index
    %c0_2 = arith.constant 0 : index
    %2 = vector.load %arg1[%c0_1, %c0_2] : memref<8x128xf32, #tpu.memory_space<vmem>>, vector<8x128xf32>
    tpu.vector_store %arg1[%c0_1, %c0_2], %1 {strides = array<i32>} : memref<8x128xf32, #tpu.memory_space<vmem>>, vector<8x128xf32>,
    return
  }
}

</mosaic_0001>

<llo_original>
// kernel: tpu_custom_call.1
$region0: #{tpu_custom_call.1}
  #allocation0 [shape = 'u32[]', space=smem, size = 0x4, offset = 0x4, fixed_abs, tag = 'smem constant byte address 0x4 - core index']
  #allocation1 [shape = 'u32[144,128]{1,0:T(1,128)}', space=vmem, size = 0x12000, scoped, tag = 'internal scratch']
  %s0 = inlined_call_operand.hbm [shape: f32[8,128], index: 0, kind: input, shape index: {}]
  %s1 = inlined_call_operand.hbm [shape: f32[8,128], index: 1, kind: output, shape index: {}]
  %s2 = sld [smem:[#allocation0]]
  $region18: #{tpu_custom_call.1} parent=0
    _
  %s4 = ssub.s32 1, %s2
  %s5 = scalar_select 0, %s4, %s2
  $region1: #{tpu_custom_call.1} parent=0
    #allocation2 [shape = 'u8[4096]{0}', space=vmem, size = 0x1000, scoped, tag = 'input window, operand 0, single buffered']
    #allocation3 [shape = 's32[1]{0}', space=sflag, size = 0x4, scoped, tag = 'scoped memory for tpu_custom_call.1']
    #allocation4 [shape = 's32[1]{0}', space=sflag, size = 0x4, scoped, tag = 'scoped memory for tpu_custom_call.1']
    #allocation5 [shape = 'u8[4096]{0}', space=vmem, size = 0x1000, scoped, tag = 'output window, operand 0, single buffered']
    %6 = vsyncpa [#allocation3], 0
    %7 = vsyncpa [#allocation4], 0
    // Predicated region
    $region2: #{tpu_custom_call.1} parent=1 // pred_check
      _
    $region3: #{tpu_custom_call.1} parent=1 // pred_check_branch
      %9 = sbr.rel (0) target = $region5
    $region4: #{tpu_custom_call.1} parent=1 // pred_region
      %s11 = ssub.s32 128, 128
      %12 = vsyncadd [#allocation3], %s11
      %s14 = sshll.u32 [#allocation2], 4
      %s15 = int_to_ptr.vmem [resolvable:$true] %s14
      %17 = dma.hbm_to_vmem [thread:$0]  %s0, 128, %s15, [#allocation3]
    $region5: #{tpu_custom_call.1} parent=1 // pred_fallthru
      _
    // Predicated region
    $region6: #{tpu_custom_call.1} parent=1 // pred_check
      _
    $region7: #{tpu_custom_call.1} parent=1 // pred_check_branch
      %19 = sbr.rel (0) target = $region9
    $region8: #{tpu_custom_call.1} parent=1 // pred_region
      %20 = dma.done [#allocation3], 128
    $region9: #{tpu_custom_call.1} parent=1 // pred_fallthru
      _
    %v21 = vld [vmem:[#allocation2] sm:$0xff]
    %22 = vrot.lane.b32.xlu0 %v21, 1
    %v23 = vpop.permute.xlu0 %22
    %24 = vst [vmem:[#allocation5] sm:$0xff] %v23
    // Predicated region
    $region10: #{tpu_custom_call.1} parent=1 // pred_check
      _
    $region11: #{tpu_custom_call.1} parent=1 // pred_check_branch
      %26 = sbr.rel (0) target = $region13
    $region12: #{tpu_custom_call.1} parent=1 // pred_region
      %s28 = ssub.s32 128, 128
      %29 = vsyncadd [#allocation4], %s28
      %s31 = sshll.u32 [#allocation5], 4
      %s32 = int_to_ptr.vmem [resolvable:$true] %s31
      %34 = dma.vmem_to_hbm [thread:$0]  %s32, 128, %s1, [#allocation4]
    $region13: #{tpu_custom_call.1} parent=1 // pred_fallthru
      _
    // Predicated region
    $region14: #{tpu_custom_call.1} parent=1 // pred_check
      _
    $region15: #{tpu_custom_call.1} parent=1 // pred_check_branch
      %36 = sbr.rel (0) target = $region17
    $region16: #{tpu_custom_call.1} parent=1 // pred_region
      %37 = dma.done [#allocation4], 128
    $region17: #{tpu_custom_call.1} parent=1 // pred_fallthru
      _
    %38 = vsyncpa [#allocation3], 1
    %39 = vsyncpa [#allocation4], 1

</llo_original>
